<compile_context>
chip_gen: v5e
topology: v5e:2x2
jax: 0.10.0
libtpu: 0.0.40
codegen_flags: <defaults>
</compile_context>

<pallas_src>
import numpy as np
import jax
import jax.numpy as jnp
from jax import lax
from jax.experimental import pallas as pl
from jax.experimental.pallas import tpu as pltpu

SEQ = 8
BATCH = 2
D = 32                      # encoding_size
NUM_HEADS = 4
HEAD_DIM = D // NUM_HEADS   # 8
D_FF = 64
LN_EPS = 1e-5
ROWS = BATCH * SEQ          # 16
HROWS = NUM_HEADS * ROWS    # 64

# ---- parameter-slab row layout (static offsets, built once in pack_params) --
_W_QKVO_R = 0      # rows   0:32 , cols 0:128  [Wq | Wk | Wv | Wo]
_B_QKVO_R = 32     # row    32   , cols 0:128  [bq | bk | bv | bo]
_B1_R = 33         # row    33   , cols 0:64   b1
_B2_R = 34         # row    34   , cols 0:32   b2
_G1_R = 35         # row    35   , cols 0:32   ln1 gamma
_BE1_R = 36        # row    36   , cols 0:32   ln1 beta
_G2_R = 37         # row    37   , cols 0:32   ln2 gamma
_BE2_R = 38        # row    38   , cols 0:32   ln2 beta
_W1_R = 40         # rows  40:72 , cols 0:64   W1
_W2_R = 72         # rows  72:136, cols 0:32   W2
_MASK_R = 136      # rows 136:200, cols 0:64   head+batch additive mask (64,64)
SLAB_ROWS = 200


def _layer_norm(x, gamma, beta):
    mean = jnp.mean(x, axis=-1, keepdims=True)
    var = jnp.mean((x - mean) ** 2, axis=-1, keepdims=True)
    return (x - mean) * jax.lax.rsqrt(var + LN_EPS) * gamma + beta


def encoder_layer_kernel(x_ref, slab_ref, o_ref):
    x = x_ref[...].astype(jnp.float32)                       # (16, 32)

    # ---- fused Q/K/V/(O) projection: one (16,32)@(32,128) MXU push ---------
    proj = jnp.dot(x, slab_ref[_W_QKVO_R:_W_QKVO_R + D, :],
                   preferred_element_type=jnp.float32)
    proj = proj + slab_ref[_B_QKVO_R:_B_QKVO_R + 1, :]        # (16, 128)
    # (last 32 cols = x@Wo + bo are unused filler riding the same push)

    # ---- all 4 heads in one attention pass ---------------------------------
    # Stack heads along sublanes: row i of the (64, 8) slabs is
    # (head = i // 16, orig_row = i % 16); orig_row = s*BATCH + b.
    def head_stack(t):                                        # t: (16, 32)
        return jnp.concatenate(
            [t[:, h * HEAD_DIM:(h + 1) * HEAD_DIM] for h in range(NUM_HEADS)],
            axis=0)                                           # (64, 8)

    q64 = head_stack(proj[:, 0:D])
    k64 = head_stack(proj[:, D:2 * D])
    v64 = head_stack(proj[:, 2 * D:3 * D])

    scale = 1.0 / (HEAD_DIM ** 0.5)
    nt_dims = (((1,), (1,)), ((), ()))                        # contract last dims
    s = lax.dot_general(q64, k64, nt_dims,
                        preferred_element_type=jnp.float32) * scale
    # additive mask: 0 where same head AND same batch, -1e30 otherwise
    s = s + slab_ref[_MASK_R:_MASK_R + HROWS, 0:HROWS]        # (64, 64)

    # single softmax chain for every (head, row)
    s = s - jnp.max(s, axis=-1, keepdims=True)
    p = jnp.exp(s)
    p = p * pl.reciprocal(jnp.sum(p, axis=-1, keepdims=True), approx=True)

    ctx64 = jnp.dot(p, v64, preferred_element_type=jnp.float32)   # (64, 8)

    # Fold each head's context straight into the Wo projection (accumulate).
    wo = slab_ref[_W_QKVO_R:_W_QKVO_R + D, 3 * D:4 * D]       # (32, 32)
    bo = slab_ref[_B_QKVO_R:_B_QKVO_R + 1, 3 * D:4 * D]       # (1, 32)
    attn = jnp.zeros((ROWS, D), jnp.float32)
    for h in range(NUM_HEADS):                                # static, tiny H
        attn = attn + jnp.dot(ctx64[h * ROWS:(h + 1) * ROWS, :],
                              wo[h * HEAD_DIM:(h + 1) * HEAD_DIM, :],
                              preferred_element_type=jnp.float32)
    attn = attn + bo

    # ---- residual + layernorm 1 ---------------------------------------------
    h1 = _layer_norm(x + attn,
                     slab_ref[_G1_R:_G1_R + 1, 0:D],
                     slab_ref[_BE1_R:_BE1_R + 1, 0:D])
    # TODO(synk): dropout_layer1 is identity in eval mode (no RNG drop applied).

    # ---- feed forward --------------------------------------------------------
    ff = jnp.dot(h1, slab_ref[_W1_R:_W1_R + D, 0:D_FF],
                 preferred_element_type=jnp.float32)
    ff = jnp.maximum(ff + slab_ref[_B1_R:_B1_R + 1, 0:D_FF], 0.0)
    ff = jnp.dot(ff, slab_ref[_W2_R:_W2_R + D_FF, 0:D],
                 preferred_element_type=jnp.float32)
    ff = ff + slab_ref[_B2_R:_B2_R + 1, 0:D]

    # ---- residual + layernorm 2 ---------------------------------------------
    h2 = _layer_norm(h1 + ff,
                     slab_ref[_G2_R:_G2_R + 1, 0:D],
                     slab_ref[_BE2_R:_BE2_R + 1, 0:D])
    # TODO(synk): dropout_layer2 is identity in eval mode (no RNG drop applied).

    o_ref[...] = h2.astype(o_ref.dtype)


def pack_params(params):
    """Pack every parameter + the attention mask into one lane-dense (200,128)
    f32 slab.  Built ONCE at setup time (numpy) — not per forward call."""
    (wq, bq, wk, bk, wv, bv, wo, bo,
     g1, be1, w1, b1, w2, b2, g2, be2) = [np.asarray(p, np.float32) for p in params]

    slab = np.zeros((SLAB_ROWS, 128), np.float32)
    slab[_W_QKVO_R:_W_QKVO_R + D, 0:D] = wq
    slab[_W_QKVO_R:_W_QKVO_R + D, D:2 * D] = wk
    slab[_W_QKVO_R:_W_QKVO_R + D, 2 * D:3 * D] = wv
    slab[_W_QKVO_R:_W_QKVO_R + D, 3 * D:4 * D] = wo
    slab[_B_QKVO_R, 0:D] = bq[0]
    slab[_B_QKVO_R, D:2 * D] = bk[0]
    slab[_B_QKVO_R, 2 * D:3 * D] = bv[0]
    slab[_B_QKVO_R, 3 * D:4 * D] = bo[0]
    slab[_B1_R, 0:D_FF] = b1[0]
    slab[_B2_R, 0:D] = b2[0]
    slab[_G1_R, 0:D] = g1[0]
    slab[_BE1_R, 0:D] = be1[0]
    slab[_G2_R, 0:D] = g2[0]
    slab[_BE2_R, 0:D] = be2[0]
    slab[_W1_R:_W1_R + D, 0:D_FF] = w1
    slab[_W2_R:_W2_R + D_FF, 0:D] = w2

    # combined head+batch block-diagonal additive mask for the head-stacked
    # (64, 64) score matrix: row i -> head = i // ROWS, batch = (i % ROWS) % BATCH
    idx = np.arange(HROWS)
    head = idx // ROWS
    batch = (idx % ROWS) % BATCH
    ok = (head[:, None] == head[None, :]) & (batch[:, None] == batch[None, :])
    slab[_MASK_R:_MASK_R + HROWS, 0:HROWS] = np.where(ok, 0.0, -1e30)

    return jnp.asarray(slab)


def encoder_layer_pallas(x_sbd, slab):
    """x_sbd: (seq, batch, d) like the PyTorch module. Returns same layout.
    `slab` is the pre-packed parameter slab from pack_params."""
    x_flat = x_sbd.reshape(ROWS, D)      # seq-major interleaved rows, no transpose

    vmem = pl.BlockSpec(memory_space=pltpu.MemorySpace.VMEM)
    out = pl.pallas_call(
        encoder_layer_kernel,
        out_shape=jax.ShapeDtypeStruct((ROWS, D), jnp.float32),
        in_specs=[vmem, vmem],
        out_specs=vmem,
    )(x_flat, slab)

    return out.reshape(SEQ, BATCH, D)    # no transpose on the way out either


def encoder_layer_ref(x_sbd, params):
    """Pure-JAX reference with identical math (for verification)."""
    (wq, bq, wk, bk, wv, bv, wo, bo, g1, be1, w1, b1, w2, b2, g2, be2) = params
    x = jnp.transpose(x_sbd, (1, 0, 2)).astype(jnp.float32)  # (B, S, D)

    q = x @ wq + bq
    k = x @ wk + bk
    v = x @ wv + bv

    def split(t):  # (B, S, D) -> (B, H, S, dh)
        return t.reshape(BATCH, SEQ, NUM_HEADS, HEAD_DIM).transpose(0, 2, 1, 3)

    qh, kh, vh = split(q), split(k), split(v)
    s = jnp.einsum("bhqd,bhkd->bhqk", qh, kh) / (HEAD_DIM ** 0.5)
    p = jax.nn.softmax(s, axis=-1)
    o = jnp.einsum("bhqk,bhkd->bhqd", p, vh)
    o = o.transpose(0, 2, 1, 3).reshape(BATCH, SEQ, D)
    attn = o @ wo + bo

    h1 = _layer_norm(x + attn, g1, be1)
    ff = jnp.maximum(h1 @ w1 + b1, 0.0) @ w2 + b2
    h2 = _layer_norm(h1 + ff, g2, be2)
    return jnp.transpose(h2, (1, 0, 2))


def make_params(key):
    keys = jax.random.split(key, 12)
    n = lambda k, shape, s=0.1: (jax.random.normal(k, shape, jnp.float32) * s)
    wq = n(keys[0], (D, D)); bq = n(keys[1], (1, D), 0.01)
    wk = n(keys[2], (D, D)); bk = n(keys[3], (1, D), 0.01)
    wv = n(keys[4], (D, D)); bv = n(keys[5], (1, D), 0.01)
    wo = n(keys[6], (D, D)); bo = n(keys[7], (1, D), 0.01)
    g1 = jnp.ones((1, D), jnp.float32); be1 = jnp.zeros((1, D), jnp.float32)
    w1 = n(keys[8], (D, D_FF)); b1 = n(keys[9], (1, D_FF), 0.01)
    w2 = n(keys[10], (D_FF, D)); b2 = n(keys[11], (1, D), 0.01)
    g2 = jnp.ones((1, D), jnp.float32); be2 = jnp.zeros((1, D), jnp.float32)
    return (wq, bq, wk, bk, wv, bv, wo, bo, g1, be1, w1, b1, w2, b2, g2, be2)


if __name__ == "__main__":
    key = jax.random.PRNGKey(0)
    k_x, k_p = jax.random.split(key)
    # PyTorch layout: (seq_len, batch_size, encoding_size)
    x = jax.random.normal(k_x, (SEQ, BATCH, D), jnp.float32)
    params = make_params(k_p)
    slab = pack_params(params)          # built once, reused every forward call

    out = encoder_layer_pallas(x, slab)
    out = jax.block_until_ready(out)

    ref = encoder_layer_ref(x, params)
    assert out.shape == (SEQ, BATCH, D)
    # Slightly relaxed tolerance: softmax denom uses the EUP approx reciprocal.
    assert jnp.allclose(out, ref, atol=2e-3, rtol=2e-3), (
        float(jnp.max(jnp.abs(out - ref))))
    print("KERNEL_OK")
</pallas_src>

<mosaic_0001>
module attributes {stable_mosaic.version = 11 : i64} {
  func.func @encoder_layer_kernel(%arg0: memref<16x32xf32, #tpu.memory_space<vmem>>, %arg1: memref<200x128xf32, #tpu.memory_space<vmem>>, %arg2: memref<16x32xf32, #tpu.memory_space<vmem>>) attributes {dimension_semantics = [], scalar_prefetch = 0 : i64, scratch_operands = 0 : i64, tpu.core_type = #tpu.core_type<tc>} {
    %c0 = arith.constant 0 : index
    %c0_0 = arith.constant 0 : index
    %0 = vector.load %arg0[%c0, %c0_0] : memref<16x32xf32, #tpu.memory_space<vmem>>, vector<16x32xf32>
    %c0_1 = arith.constant 0 : index
    %c0_2 = arith.constant 0 : index
    %1 = vector.load %arg1[%c0_1, %c0_2] : memref<200x128xf32, #tpu.memory_space<vmem>>, vector<32x128xf32>
    %cst = arith.constant dense<0.000000e+00> : vector<16x128xf32>
    %2 = tpu.matmul %0, %1, %cst {dimension_numbers = #tpu.dot_dimension_numbers<[1], [0], [0], [1], [0, 0, 1, 1], [], []>} : vector<16x32xf32>, vector<32x128xf32>, vector<16x128xf32> -> vector<16x128xf32>
    %c32 = arith.constant 32 : index
    %c0_3 = arith.constant 0 : index
    %3 = vector.load %arg1[%c32, %c0_3] : memref<200x128xf32, #tpu.memory_space<vmem>>, vector<1x128xf32>
    %4 = vector.broadcast %3 : vector<1x128xf32> to vector<16x128xf32>
    %5 = arith.addf %2, %4 : vector<16x128xf32>
    %6 = vector.extract_strided_slice %5 {offsets = [0, 0], sizes = [16, 32], strides = [1, 1]} : vector<16x128xf32> to vector<16x32xf32>
    %7 = vector.extract_strided_slice %6 {offsets = [0, 0], sizes = [16, 8], strides = [1, 1]} : vector<16x32xf32> to vector<16x8xf32>
    %8 = vector.extract_strided_slice %6 {offsets = [0, 8], sizes = [16, 8], strides = [1, 1]} : vector<16x32xf32> to vector<16x8xf32>
    %9 = vector.extract_strided_slice %6 {offsets = [0, 16], sizes = [16, 8], strides = [1, 1]} : vector<16x32xf32> to vector<16x8xf32>
    %10 = vector.extract_strided_slice %6 {offsets = [0, 24], sizes = [16, 8], strides = [1, 1]} : vector<16x32xf32> to vector<16x8xf32>
    %11 = tpu.concatenate %7, %8, %9, %10 in 0 : vector<16x8xf32>, vector<16x8xf32>, vector<16x8xf32>, vector<16x8xf32> -> vector<64x8xf32>
    %12 = vector.extract_strided_slice %5 {offsets = [0, 32], sizes = [16, 32], strides = [1, 1]} : vector<16x128xf32> to vector<16x32xf32>
    %13 = vector.extract_strided_slice %12 {offsets = [0, 0], sizes = [16, 8], strides = [1, 1]} : vector<16x32xf32> to vector<16x8xf32>
    %14 = vector.extract_strided_slice %12 {offsets = [0, 8], sizes = [16, 8], strides = [1, 1]} : vector<16x32xf32> to vector<16x8xf32>
    %15 = vector.extract_strided_slice %12 {offsets = [0, 16], sizes = [16, 8], strides = [1, 1]} : vector<16x32xf32> to vector<16x8xf32>
    %16 = vector.extract_strided_slice %12 {offsets = [0, 24], sizes = [16, 8], strides = [1, 1]} : vector<16x32xf32> to vector<16x8xf32>
    %17 = tpu.concatenate %13, %14, %15, %16 in 0 : vector<16x8xf32>, vector<16x8xf32>, vector<16x8xf32>, vector<16x8xf32> -> vector<64x8xf32>
    %18 = vector.extract_strided_slice %5 {offsets = [0, 64], sizes = [16, 32], strides = [1, 1]} : vector<16x128xf32> to vector<16x32xf32>
    %19 = vector.extract_strided_slice %18 {offsets = [0, 0], sizes = [16, 8], strides = [1, 1]} : vector<16x32xf32> to vector<16x8xf32>
    %20 = vector.extract_strided_slice %18 {offsets = [0, 8], sizes = [16, 8], strides = [1, 1]} : vector<16x32xf32> to vector<16x8xf32>
    %21 = vector.extract_strided_slice %18 {offsets = [0, 16], sizes = [16, 8], strides = [1, 1]} : vector<16x32xf32> to vector<16x8xf32>
    %22 = vector.extract_strided_slice %18 {offsets = [0, 24], sizes = [16, 8], strides = [1, 1]} : vector<16x32xf32> to vector<16x8xf32>
    %23 = tpu.concatenate %19, %20, %21, %22 in 0 : vector<16x8xf32>, vector<16x8xf32>, vector<16x8xf32>, vector<16x8xf32> -> vector<64x8xf32>
    %cst_4 = arith.constant dense<0.000000e+00> : vector<64x64xf32>
    %24 = tpu.matmul %11, %17, %cst_4 {dimension_numbers = #tpu.dot_dimension_numbers<[1], [1], [0], [0], [0, 0, 1, 0], [], []>} : vector<64x8xf32>, vector<64x8xf32>, vector<64x64xf32> -> vector<64x64xf32>
    %cst_5 = arith.constant 0.353553385 : f32
    %25 = vector.broadcast %cst_5 : f32 to vector<64x64xf32>
    %26 = arith.mulf %24, %25 : vector<64x64xf32>
    %c136 = arith.constant 136 : index
    %c0_6 = arith.constant 0 : index
    %27 = vector.load %arg1[%c136, %c0_6] : memref<200x128xf32, #tpu.memory_space<vmem>>, vector<64x64xf32>
    %28 = arith.addf %26, %27 : vector<64x64xf32>
    %cst_7 = arith.constant dense<0xFF800000> : vector<64xf32>
    %29 = vector.multi_reduction <maximumf>, %28, %cst_7 [1] : vector<64x64xf32> to vector<64xf32>
    %30 = vector.shape_cast %29 : vector<64xf32> to vector<64x1xf32>
    %31 = vector.broadcast %30 : vector<64x1xf32> to vector<64x64xf32>
    %32 = arith.subf %28, %31 : vector<64x64xf32>
    %33 = math.exp %32 : vector<64x64xf32>
    %cst_8 = arith.constant dense<0.000000e+00> : vector<64xf32>
    %34 = vector.multi_reduction <add>, %33, %cst_8 [1] : vector<64x64xf32> to vector<64xf32>
    %35 = vector.shape_cast %34 : vector<64xf32> to vector<64x1xf32>
    %36 = tpu.reciprocal %35 {approx = true} : vector<64x1xf32> -> vector<64x1xf32>
    %37 = vector.broadcast %36 : vector<64x1xf32> to vector<64x64xf32>
    %38 = arith.mulf %33, %37 : vector<64x64xf32>
    %cst_9 = arith.constant dense<0.000000e+00> : vector<64x8xf32>
    %39 = tpu.matmul %38, %23, %cst_9 {dimension_numbers = #tpu.dot_dimension_numbers<[1], [0], [0], [1], [0, 0, 1, 1], [], []>} : vector<64x64xf32>, vector<64x8xf32>, vector<64x8xf32> -> vector<64x8xf32>
    %c0_10 = arith.constant 0 : index
    %c96 = arith.constant 96 : index
    %40 = vector.load %arg1[%c0_10, %c96] : memref<200x128xf32, #tpu.memory_space<vmem>>, vector<32x32xf32>
    %c32_11 = arith.constant 32 : index
    %c96_12 = arith.constant 96 : index
    %41 = vector.load %arg1[%c32_11, %c96_12] : memref<200x128xf32, #tpu.memory_space<vmem>>, vector<1x32xf32>
    %cst_13 = arith.constant 0.000000e+00 : f32
    %42 = vector.broadcast %cst_13 : f32 to vector<16x32xf32>
    %43 = vector.extract_strided_slice %39 {offsets = [0, 0], sizes = [16, 8], strides = [1, 1]} : vector<64x8xf32> to vector<16x8xf32>
    %44 = vector.extract_strided_slice %40 {offsets = [0, 0], sizes = [8, 32], strides = [1, 1]} : vector<32x32xf32> to vector<8x32xf32>
    %cst_14 = arith.constant dense<0.000000e+00> : vector<16x32xf32>
    %45 = tpu.matmul %43, %44, %cst_14 {dimension_numbers = #tpu.dot_dimension_numbers<[1], [0], [0], [1], [0, 0, 1, 1], [], []>} : vector<16x8xf32>, vector<8x32xf32>, vector<16x32xf32> -> vector<16x32xf32>
    %46 = arith.addf %42, %45 : vector<16x32xf32>
    %47 = vector.extract_strided_slice %39 {offsets = [16, 0], sizes = [16, 8], strides = [1, 1]} : vector<64x8xf32> to vector<16x8xf32>
    %48 = vector.extract_strided_slice %40 {offsets = [8, 0], sizes = [8, 32], strides = [1, 1]} : vector<32x32xf32> to vector<8x32xf32>
    %cst_15 = arith.constant dense<0.000000e+00> : vector<16x32xf32>
    %49 = tpu.matmul %47, %48, %cst_15 {dimension_numbers = #tpu.dot_dimension_numbers<[1], [0], [0], [1], [0, 0, 1, 1], [], []>} : vector<16x8xf32>, vector<8x32xf32>, vector<16x32xf32> -> vector<16x32xf32>
    %50 = arith.addf %46, %49 : vector<16x32xf32>
    %51 = vector.extract_strided_slice %39 {offsets = [32, 0], sizes = [16, 8], strides = [1, 1]} : vector<64x8xf32> to vector<16x8xf32>
    %52 = vector.extract_strided_slice %40 {offsets = [16, 0], sizes = [8, 32], strides = [1, 1]} : vector<32x32xf32> to vector<8x32xf32>
    %cst_16 = arith.constant dense<0.000000e+00> : vector<16x32xf32>
    %53 = tpu.matmul %51, %52, %cst_16 {dimension_numbers = #tpu.dot_dimension_numbers<[1], [0], [0], [1], [0, 0, 1, 1], [], []>} : vector<16x8xf32>, vector<8x32xf32>, vector<16x32xf32> -> vector<16x32xf32>
    %54 = arith.addf %50, %53 : vector<16x32xf32>
    %55 = vector.extract_strided_slice %39 {offsets = [48, 0], sizes = [16, 8], strides = [1, 1]} : vector<64x8xf32> to vector<16x8xf32>
    %56 = vector.extract_strided_slice %40 {offsets = [24, 0], sizes = [8, 32], strides = [1, 1]} : vector<32x32xf32> to vector<8x32xf32>
    %cst_17 = arith.constant dense<0.000000e+00> : vector<16x32xf32>
    %57 = tpu.matmul %55, %56, %cst_17 {dimension_numbers = #tpu.dot_dimension_numbers<[1], [0], [0], [1], [0, 0, 1, 1], [], []>} : vector<16x8xf32>, vector<8x32xf32>, vector<16x32xf32> -> vector<16x32xf32>
    %58 = arith.addf %54, %57 : vector<16x32xf32>
    %59 = vector.broadcast %41 : vector<1x32xf32> to vector<16x32xf32>
    %60 = arith.addf %58, %59 : vector<16x32xf32>
    %61 = arith.addf %0, %60 : vector<16x32xf32>
    %c35 = arith.constant 35 : index
    %c0_18 = arith.constant 0 : index
    %62 = vector.load %arg1[%c35, %c0_18] : memref<200x128xf32, #tpu.memory_space<vmem>>, vector<1x32xf32>
    %c36 = arith.constant 36 : index
    %c0_19 = arith.constant 0 : index
    %63 = vector.load %arg1[%c36, %c0_19] : memref<200x128xf32, #tpu.memory_space<vmem>>, vector<1x32xf32>
    %cst_20 = arith.constant dense<0.000000e+00> : vector<16xf32>
    %64 = vector.multi_reduction <add>, %61, %cst_20 [1] : vector<16x32xf32> to vector<16xf32>
    %65 = vector.shape_cast %64 : vector<16xf32> to vector<16x1xf32>
    %cst_21 = arith.constant 3.200000e+01 : f32
    %66 = vector.broadcast %cst_21 : f32 to vector<16x1xf32>
    %67 = arith.divf %65, %66 : vector<16x1xf32>
    %68 = vector.broadcast %67 : vector<16x1xf32> to vector<16x32xf32>
    %69 = arith.subf %61, %68 : vector<16x32xf32>
    %70 = arith.mulf %69, %69 : vector<16x32xf32>
    %cst_22 = arith.constant dense<0.000000e+00> : vector<16xf32>
    %71 = vector.multi_reduction <add>, %70, %cst_22 [1] : vector<16x32xf32> to vector<16xf32>
    %72 = vector.shape_cast %71 : vector<16xf32> to vector<16x1xf32>
    %cst_23 = arith.constant 3.200000e+01 : f32
    %73 = vector.broadcast %cst_23 : f32 to vector<16x1xf32>
    %74 = arith.divf %72, %73 : vector<16x1xf32>
    %75 = vector.broadcast %67 : vector<16x1xf32> to vector<16x32xf32>
    %76 = arith.subf %61, %75 : vector<16x32xf32>
    %cst_24 = arith.constant 9.99999974E-6 : f32
    %77 = vector.broadcast %cst_24 : f32 to vector<16x1xf32>
    %78 = arith.addf %74, %77 : vector<16x1xf32>
    %79 = math.rsqrt %78 : vector<16x1xf32>
    %80 = vector.broadcast %79 : vector<16x1xf32> to vector<16x32xf32>
    %81 = arith.mulf %76, %80 : vector<16x32xf32>
    %82 = vector.broadcast %62 : vector<1x32xf32> to vector<16x32xf32>
    %83 = arith.mulf %81, %82 : vector<16x32xf32>
    %84 = vector.broadcast %63 : vector<1x32xf32> to vector<16x32xf32>
    %85 = arith.addf %83, %84 : vector<16x32xf32>
    %c40 = arith.constant 40 : index
    %c0_25 = arith.constant 0 : index
    %86 = vector.load %arg1[%c40, %c0_25] : memref<200x128xf32, #tpu.memory_space<vmem>>, vector<32x64xf32>
    %cst_26 = arith.constant dense<0.000000e+00> : vector<16x64xf32>
    %87 = tpu.matmul %85, %86, %cst_26 {dimension_numbers = #tpu.dot_dimension_numbers<[1], [0], [0], [1], [0, 0, 1, 1], [], []>} : vector<16x32xf32>, vector<32x64xf32>, vector<16x64xf32> -> vector<16x64xf32>
    %c33 = arith.constant 33 : index
    %c0_27 = arith.constant 0 : index
    %88 = vector.load %arg1[%c33, %c0_27] : memref<200x128xf32, #tpu.memory_space<vmem>>, vector<1x64xf32>
    %89 = vector.broadcast %88 : vector<1x64xf32> to vector<16x64xf32>
    %90 = arith.addf %87, %89 : vector<16x64xf32>
    %cst_28 = arith.constant 0.000000e+00 : f32
    %91 = vector.broadcast %cst_28 : f32 to vector<16x64xf32>
    %92 = arith.maximumf %90, %91 : vector<16x64xf32>
    %c72 = arith.constant 72 : index
    %c0_29 = arith.constant 0 : index
    %93 = vector.load %arg1[%c72, %c0_29] : memref<200x128xf32, #tpu.memory_space<vmem>>, vector<64x32xf32>
    %cst_30 = arith.constant dense<0.000000e+00> : vector<16x32xf32>
    %94 = tpu.matmul %92, %93, %cst_30 {dimension_numbers = #tpu.dot_dimension_numbers<[1], [0], [0], [1], [0, 0, 1, 1], [], []>} : vector<16x64xf32>, vector<64x32xf32>, vector<16x32xf32> -> vector<16x32xf32>
    %c34 = arith.constant 34 : index
    %c0_31 = arith.constant 0 : index
    %95 = vector.load %arg1[%c34, %c0_31] : memref<200x128xf32, #tpu.memory_space<vmem>>, vector<1x32xf32>
    %96 = vector.broadcast %95 : vector<1x32xf32> to vector<16x32xf32>
    %97 = arith.addf %94, %96 : vector<16x32xf32>
    %98 = arith.addf %85, %97 : vector<16x32xf32>
    %c37 = arith.constant 37 : index
    %c0_32 = arith.constant 0 : index
    %99 = vector.load %arg1[%c37, %c0_32] : memref<200x128xf32, #tpu.memory_space<vmem>>, vector<1x32xf32>
    %c38 = arith.constant 38 : index
    %c0_33 = arith.constant 0 : index
    %100 = vector.load %arg1[%c38, %c0_33] : memref<200x128xf32, #tpu.memory_space<vmem>>, vector<1x32xf32>
    %cst_34 = arith.constant dense<0.000000e+00> : vector<16xf32>
    %101 = vector.multi_reduction <add>, %98, %cst_34 [1] : vector<16x32xf32> to vector<16xf32>
    %102 = vector.shape_cast %101 : vector<16xf32> to vector<16x1xf32>
    %cst_35 = arith.constant 3.200000e+01 : f32
    %103 = vector.broadcast %cst_35 : f32 to vector<16x1xf32>
    %104 = arith.divf %102, %103 : vector<16x1xf32>
    %105 = vector.broadcast %104 : vector<16x1xf32> to vector<16x32xf32>
    %106 = arith.subf %98, %105 : vector<16x32xf32>
    %107 = arith.mulf %106, %106 : vector<16x32xf32>
    %cst_36 = arith.constant dense<0.000000e+00> : vector<16xf32>
    %108 = vector.multi_reduction <add>, %107, %cst_36 [1] : vector<16x32xf32> to vector<16xf32>
    %109 = vector.shape_cast %108 : vector<16xf32> to vector<16x1xf32>
    %cst_37 = arith.constant 3.200000e+01 : f32
    %110 = vector.broadcast %cst_37 : f32 to vector<16x1xf32>
    %111 = arith.divf %109, %110 : vector<16x1xf32>
    %112 = vector.broadcast %104 : vector<16x1xf32> to vector<16x32xf32>
    %113 = arith.subf %98, %112 : vector<16x32xf32>
    %cst_38 = arith.constant 9.99999974E-6 : f32
    %114 = vector.broadcast %cst_38 : f32 to vector<16x1xf32>
    %115 = arith.addf %111, %114 : vector<16x1xf32>
    %116 = math.rsqrt %115 : vector<16x1xf32>
    %117 = vector.broadcast %116 : vector<16x1xf32> to vector<16x32xf32>
    %118 = arith.mulf %113, %117 : vector<16x32xf32>
    %119 = vector.broadcast %99 : vector<1x32xf32> to vector<16x32xf32>
    %120 = arith.mulf %118, %119 : vector<16x32xf32>
    %121 = vector.broadcast %100 : vector<1x32xf32> to vector<16x32xf32>
    %122 = arith.addf %120, %121 : vector<16x32xf32>
    %c0_39 = arith.constant 0 : index
    %c0_40 = arith.constant 0 : index
    %123 = vector.load %arg2[%c0_39, %c0_40] : memref<16x32xf32, #tpu.memory_space<vmem>>, vector<16x32xf32>
    tpu.vector_store %arg2[%c0_39, %c0_40], %122 {strides = array<i32>} : memref<16x32xf32, #tpu.memory_space<vmem>>, vector<16x32xf32>,
    return
  }
}

</mosaic_0001>

<llo_original>
// kernel: tpu_custom_call.1
$region0: #{tpu_custom_call.1}
  #allocation0 [shape = 'u32[]', space=smem, size = 0x4, offset = 0x4, fixed_abs, tag = 'smem constant byte address 0x4 - core index']
  #allocation1 [shape = 'u32[72,128]{1,0:T(1,128)}', space=vmem, size = 0x9000, scoped, tag = 'internal scratch']
  %s0 = inlined_call_operand.hbm [shape: f32[16,32], index: 0, kind: input, shape index: {}]
  %s1 = inlined_call_operand.hbm [shape: f32[200,128], index: 1, kind: input, shape index: {}]
  %s2 = inlined_call_operand.hbm [shape: f32[16,32], index: 2, kind: output, shape index: {}]
  %s3 = sld [smem:[#allocation0]]
  $region26: #{tpu_custom_call.1} parent=0
    _
  %s5 = ssub.s32 1, %s3
  %s6 = scalar_select 0, %s5, %s3
  $region1: #{tpu_custom_call.1} parent=0
    #allocation2 [shape = 'u8[8192]{0}', space=vmem, size = 0x2000, scoped, tag = 'input window, operand 0, single buffered']
    #allocation3 [shape = 's32[1]{0}', space=sflag, size = 0x4, scoped, tag = 'scoped memory for tpu_custom_call.1']
    #allocation4 [shape = 's32[1]{0}', space=sflag, size = 0x4, scoped, tag = 'scoped memory for tpu_custom_call.1']
    #allocation5 [shape = 'u8[102400]{0}', space=vmem, size = 0x19000, scoped, tag = 'input window, operand 1, single buffered']
    #allocation6 [shape = 's32[1]{0}', space=sflag, size = 0x4, scoped, tag = 'scoped memory for tpu_custom_call.1']
    #allocation7 [shape = 'u8[8192]{0}', space=vmem, size = 0x2000, scoped, tag = 'output window, operand 0, single buffered']
    %7 = vsyncpa [#allocation3], 0
    %8 = vsyncpa [#allocation6], 0
    %9 = vsyncpa [#allocation4], 0
    // Predicated region
    $region2: #{tpu_custom_call.1} parent=1 // pred_check
      _
    $region3: #{tpu_custom_call.1} parent=1 // pred_check_branch
      %11 = sbr.rel (0) target = $region5
    $region4: #{tpu_custom_call.1} parent=1 // pred_region
      %13 = vsyncadd [#allocation3], 0
      %s14 = sshll.u32 %s0, 4
      %s15 = int_to_ptr.hbm [resolvable:$true] %s14
      %s16 = sshll.u32 [#allocation2], 4
      %s17 = int_to_ptr.vmem [resolvable:$true] %s16
      %22 = dma.hbm_to_vmem [thread:$0]  %s15, 256, %s17, [#allocation3], 128, 128, 8
    $region5: #{tpu_custom_call.1} parent=1 // pred_fallthru
      _
    // Predicated region
    $region6: #{tpu_custom_call.1} parent=1 // pred_check
      _
    $region7: #{tpu_custom_call.1} parent=1 // pred_check_branch
      %24 = sbr.rel (0) target = $region9
    $region8: #{tpu_custom_call.1} parent=1 // pred_region
      %26 = vsyncadd [#allocation6], 0
      %s27 = sshll.u32 %s1, 4
      %s28 = int_to_ptr.hbm [resolvable:$true] %s27
      %s29 = sshll.u32 [#allocation5], 4
      %s30 = int_to_ptr.vmem [resolvable:$true] %s29
      %35 = dma.hbm_to_vmem [thread:$0]  %s28, 3200, %s30, [#allocation6], 128, 128, 8
    $region9: #{tpu_custom_call.1} parent=1 // pred_fallthru
      _
    // Predicated region
    $region10: #{tpu_custom_call.1} parent=1 // pred_check
      _
    $region11: #{tpu_custom_call.1} parent=1 // pred_check_branch
      %37 = sbr.rel (0) target = $region13
    $region12: #{tpu_custom_call.1} parent=1 // pred_region
      %39 = dma.done [#allocation3], 256
    $region13: #{tpu_custom_call.1} parent=1 // pred_fallthru
      _
    // Predicated region
    $region14: #{tpu_custom_call.1} parent=1 // pred_check
      _
    $region15: #{tpu_custom_call.1} parent=1 // pred_check_branch
      %41 = sbr.rel (0) target = $region17
    $region16: #{tpu_custom_call.1} parent=1 // pred_region
      %43 = dma.done [#allocation6], 3200
    $region17: #{tpu_custom_call.1} parent=1 // pred_fallthru
      _
    %v44 = vld [vmem:[#allocation2] sm:$0xff]
    %v45 = vld [vmem:[#allocation2 + $0x8] sm:$0xff]
    %v46 = vld [vmem:[#allocation5] sm:$0xff]
    %v47 = vld [vmem:[#allocation5 + $0x8] sm:$0xff]
    %v48 = vld [vmem:[#allocation5 + $0x10] sm:$0xff]
    %v49 = vld [vmem:[#allocation5 + $0x18] sm:$0xff]
    %v50 = vld [vmem:[#allocation5 + $0x20] sm:$0x1]
    %v51 = vperm.slane %v50, 0
    %vm52 = vcmask 261120
    %v54 = vsel %vm52, %v44, 0
    %v57 = vsel %vm52, %v45, 0
    %59 = vmatpush.msra.mxu0 0.0
    %60 = vmatpush.msra.mxu0 0.0
    %61 = vmatpush.msra.mxu0 0.0
    %62 = vmatpush.msra.mxu0 0.0
    %63 = vmatpush.msra.mxu0 0.0
    %64 = vmatpush.msra.mxu0 0.0
    %65 = vmatpush.msra.mxu0 0.0
    %66 = vmatpush.msra.mxu0 0.0
    %67 = vmatpush.msra.mxu0 0.0
    %68 = vmatpush.msra.mxu0 0.0
    %69 = vmatpush.msra.mxu0 0.0
    %70 = vmatpush.msra.mxu0 0.0
    %71 = vmatpush.msra.mxu0 %v49
    %72 = vmatpush.msra.mxu0 %v48
    %73 = vmatpush.msra.mxu0 %v47
    %74 = vmatpush.msra.mxu0 %v46
    %75 = vmatmul.f32.gmra.mxu0 %v54
    %v76 = vpop.f32.mrf.mxu0
    %v77 = vadd.f32 %v51, %v76
    %78 = vmatmul.f32.gmra.mxu0 %v57
    %v79 = vpop.f32.mrf.mxu0
    %v80 = vadd.f32 %v51, %v79
    %81 = vdwg.mxu0
    %84 = vrot.lane.b32.xlu0 %v77, 120
    %v85 = vpop.permute.xlu0 %84
    %86 = vrot.lane.b32.xlu0 %v80, 120
    %v87 = vpop.permute.xlu0 %86
    %88 = vrot.lane.b32.xlu0 %v77, 112
    %v89 = vpop.permute.xlu0 %88
    %90 = vrot.lane.b32.xlu0 %v80, 112
    %v91 = vpop.permute.xlu0 %90
    %92 = vrot.lane.b32.xlu0 %v77, 104
    %v93 = vpop.permute.xlu0 %92
    %94 = vrot.lane.b32.xlu0 %v80, 104
    %v95 = vpop.permute.xlu0 %94
    %96 = vrot.lane.b32.xlu0 %v77, 96
    %v97 = vpop.permute.xlu0 %96
    %98 = vrot.lane.b32.xlu0 %v80, 96
    %v99 = vpop.permute.xlu0 %98
    %100 = vrot.lane.b32.xlu0 %v85, 96
    %v101 = vpop.permute.xlu0 %100
    %102 = vrot.lane.b32.xlu0 %v87, 96
    %v103 = vpop.permute.xlu0 %102
    %104 = vrot.lane.b32.xlu0 %v89, 96
    %v105 = vpop.permute.xlu0 %104
    %106 = vrot.lane.b32.xlu0 %v91, 96
    %v107 = vpop.permute.xlu0 %106
    %108 = vrot.lane.b32.xlu0 %v93, 96
    %v109 = vpop.permute.xlu0 %108
    %110 = vrot.lane.b32.xlu0 %v95, 96
    %v111 = vpop.permute.xlu0 %110
    %vm112 = vcmask 64512
    %v113 = vsel %vm112, %v77, 0
    %v115 = vsel %vm112, %v80, 0
    %v117 = vsel %vm112, %v85, 0
    %v119 = vsel %vm112, %v87, 0
    %v121 = vsel %vm112, %v89, 0
    %v123 = vsel %vm112, %v91, 0
    %v125 = vsel %vm112, %v93, 0
    %v127 = vsel %vm112, %v95, 0
    %v129 = vsel %vm112, %v97, 0
    %v131 = vsel %vm112, %v99, 0
    %v133 = vsel %vm112, %v101, 0
    %v135 = vsel %vm112, %v103, 0
    %v137 = vsel %vm112, %v105, 0
    %v139 = vsel %vm112, %v107, 0
    %v141 = vsel %vm112, %v109, 0
    %v143 = vsel %vm112, %v111, 0
    %145 = vmatpush.xpose.msra.mxu0 0.0
    %146 = vmatpush.xpose.msra.mxu0 0.0
    %147 = vmatpush.xpose.msra.mxu0 0.0
    %148 = vmatpush.xpose.msra.mxu0 0.0
    %149 = vmatpush.xpose.msra.mxu0 0.0
    %150 = vmatpush.xpose.msra.mxu0 0.0
    %151 = vmatpush.xpose.msra.mxu0 0.0
    %152 = vmatpush.xpose.msra.mxu0 0.0
    %153 = vmatpush.xpose.msra.mxu0 %v143
    %154 = vmatpush.xpose.msra.mxu0 %v141
    %155 = vmatpush.xpose.msra.mxu0 %v139
    %156 = vmatpush.xpose.msra.mxu0 %v137
    %157 = vmatpush.xpose.msra.mxu0 %v135
    %158 = vmatpush.xpose.msra.mxu0 %v133
    %159 = vmatpush.xpose.msra.mxu0 %v131
    %160 = vmatpush.xpose.msra.mxu0 %v129
    %161 = vmatmul.f32.gmra.mxu0 %v113
    %v162 = vpop.f32.mrf.mxu0
    %v163 = vadd.f32 0.0, %v162
    %164 = vmatmul.f32.gmra.mxu0 %v115
    %v165 = vpop.f32.mrf.mxu0
    %v166 = vadd.f32 0.0, %v165
    %167 = vmatmul.f32.gmra.mxu0 %v117
    %v168 = vpop.f32.mrf.mxu0
    %v169 = vadd.f32 0.0, %v168
    %170 = vmatmul.f32.gmra.mxu0 %v119
    %v171 = vpop.f32.mrf.mxu0
    %v172 = vadd.f32 0.0, %v171
    %173 = vmatmul.f32.gmra.mxu0 %v121
    %v174 = vpop.f32.mrf.mxu0
    %v175 = vadd.f32 0.0, %v174
    %176 = vmatmul.f32.gmra.mxu0 %v123
    %v177 = vpop.f32.mrf.mxu0
    %v178 = vadd.f32 0.0, %v177
    %179 = vmatmul.f32.gmra.mxu0 %v125
    %v180 = vpop.f32.mrf.mxu0
    %v181 = vadd.f32 0.0, %v180
    %182 = vmatmul.f32.gmra.mxu0 %v127
    %v183 = vpop.f32.mrf.mxu0
    %v184 = vadd.f32 0.0, %v183
    %185 = vdwg.mxu0
    %v186 = vmul.f32 %v163, 0.35355338
    %v187 = vmul.f32 %v166, 0.35355338
    %v188 = vmul.f32 %v169, 0.35355338
    %v189 = vmul.f32 %v172, 0.35355338
    %v190 = vmul.f32 %v175, 0.35355338
    %v191 = vmul.f32 %v178, 0.35355338
    %v192 = vmul.f32 %v181, 0.35355338
    %v193 = vmul.f32 %v184, 0.35355338
    %v194 = vld [vmem:[#allocation5 + $0x88] sm:$0xff]
    %v195 = vld [vmem:[#allocation5 + $0x90] sm:$0xff]
    %v196 = vld [vmem:[#allocation5 + $0x98] sm:$0xff]
    %v197 = vld [vmem:[#allocation5 + $0xa0] sm:$0xff]
    %v198 = vld [vmem:[#allocation5 + $0xa8] sm:$0xff]
    %v199 = vld [vmem:[#allocation5 + $0xb0] sm:$0xff]
    %v200 = vld [vmem:[#allocation5 + $0xb8] sm:$0xff]
    %v201 = vld [vmem:[#allocation5 + $0xc0] sm:$0xff]
    %v202 = vadd.f32 %v186, %v194
    %v203 = vadd.f32 %v187, %v195
    %v204 = vadd.f32 %v188, %v196
    %v205 = vadd.f32 %v189, %v197
    %v206 = vadd.f32 %v190, %v198
    %v207 = vadd.f32 %v191, %v199
    %v208 = vadd.f32 %v192, %v200
    %v209 = vadd.f32 %v193, %v201
    %vm210 = vcmask 523264
    %v211 = vsel %vm210, %v202, -inf
    %212 = vmax.xlane.f32.xlu0 %v211
    %v213 = vpop.xlane.xlu0 %212
    %v214 = vsel %vm210, %v203, -inf
    %215 = vmax.xlane.f32.xlu0 %v214
    %v216 = vpop.xlane.xlu0 %215
    %v217 = vsel %vm210, %v204, -inf
    %218 = vmax.xlane.f32.xlu0 %v217
    %v219 = vpop.xlane.xlu0 %218
    %v220 = vsel %vm210, %v205, -inf
    %221 = vmax.xlane.f32.xlu0 %v220
    %v222 = vpop.xlane.xlu0 %221
    %v223 = vsel %vm210, %v206, -inf
    %224 = vmax.xlane.f32.xlu0 %v223
    %v225 = vpop.xlane.xlu0 %224
    %v226 = vsel %vm210, %v207, -inf
    %227 = vmax.xlane.f32.xlu0 %v226
    %v228 = vpop.xlane.xlu0 %227
    %v229 = vsel %vm210, %v208, -inf
    %230 = vmax.xlane.f32.xlu0 %v229
    %v231 = vpop.xlane.xlu0 %230
    %v232 = vsel %vm210, %v209, -inf
    %233 = vmax.xlane.f32.xlu0 %v232
    %v234 = vpop.xlane.xlu0 %233
    %v235 = vsub.f32 %v202, %v213
    %v236 = vsub.f32 %v203, %v216
    %v237 = vsub.f32 %v204, %v219
    %v238 = vsub.f32 %v205, %v222
    %v239 = vsub.f32 %v206, %v225
    %v240 = vsub.f32 %v207, %v228
    %v241 = vsub.f32 %v208, %v231
    %v242 = vsub.f32 %v209, %v234
    %v243 = vmul.f32 %v235, 1.442695
    %v244 = vpow.pop %v243
    %v245 = vmul.f32 %v236, 1.442695
    %v246 = vpow.pop %v245
    %v247 = vmul.f32 %v237, 1.442695
    %v248 = vpow.pop %v247
    %v249 = vmul.f32 %v238, 1.442695
    %v250 = vpow.pop %v249
    %v251 = vmul.f32 %v239, 1.442695
    %v252 = vpow.pop %v251
    %v253 = vmul.f32 %v240, 1.442695
    %v254 = vpow.pop %v253
    %v255 = vmul.f32 %v241, 1.442695
    %v256 = vpow.pop %v255
    %v257 = vmul.f32 %v242, 1.442695
    %v258 = vpow.pop %v257
    %v259 = vsel %vm210, %v244, 0.0
    %260 = vadd.xlane.f32.xlu0 %v259
    %v261 = vpop.xlane.xlu0 %260
    %v262 = vsel %vm210, %v246, 0.0
    %263 = vadd.xlane.f32.xlu0 %v262
    %v264 = vpop.xlane.xlu0 %263
    %v265 = vsel %vm210, %v248, 0.0
    %266 = vadd.xlane.f32.xlu0 %v265
    %v267 = vpop.xlane.xlu0 %266
    %v268 = vsel %vm210, %v250, 0.0
    %269 = vadd.xlane.f32.xlu0 %v268
    %v270 = vpop.xlane.xlu0 %269
    %v271 = vsel %vm210, %v252, 0.0
    %272 = vadd.xlane.f32.xlu0 %v271
    %v273 = vpop.xlane.xlu0 %272
    %v274 = vsel %vm210, %v254, 0.0
    %275 = vadd.xlane.f32.xlu0 %v274
    %v276 = vpop.xlane.xlu0 %275
    %v277 = vsel %vm210, %v256, 0.0
    %278 = vadd.xlane.f32.xlu0 %v277
    %v279 = vpop.xlane.xlu0 %278
    %v280 = vsel %vm210, %v258, 0.0
    %281 = vadd.xlane.f32.xlu0 %v280
    %v282 = vpop.xlane.xlu0 %281
    %v283 = vrcp.pop %v261
    %v284 = vrcp.pop %v264
    %v285 = vrcp.pop %v267
    %v286 = vrcp.pop %v270
    %v287 = vrcp.pop %v273
    %v288 = vrcp.pop %v276
    %v289 = vrcp.pop %v279
    %v290 = vrcp.pop %v282
    %v291 = vmul.f32 %v244, %v283
    %v292 = vmul.f32 %v246, %v284
    %v293 = vmul.f32 %v248, %v285
    %v294 = vmul.f32 %v250, %v286
    %v295 = vmul.f32 %v252, %v287
    %v296 = vmul.f32 %v254, %v288
    %v297 = vmul.f32 %v256, %v289
    %v298 = vmul.f32 %v258, %v290
    %299 = vrot.lane.b32.xlu0 %v77, 64
    %v300 = vpop.permute.xlu0 %299
    %301 = vrot.lane.b32.xlu0 %v80, 64
    %v302 = vpop.permute.xlu0 %301
    %303 = vrot.lane.b32.xlu0 %v85, 64
    %v304 = vpop.permute.xlu0 %303
    %305 = vrot.lane.b32.xlu0 %v87, 64
    %v306 = vpop.permute.xlu0 %305
    %307 = vrot.lane.b32.xlu0 %v89, 64
    %v308 = vpop.permute.xlu0 %307
    %309 = vrot.lane.b32.xlu0 %v91, 64
    %v310 = vpop.permute.xlu0 %309
    %311 = vrot.lane.b32.xlu0 %v93, 64
    %v312 = vpop.permute.xlu0 %311
    %313 = vrot.lane.b32.xlu0 %v95, 64
    %v314 = vpop.permute.xlu0 %313
    %v324 = vsel %vm210, %v291, 0
    %v327 = vsel %vm210, %v292, 0
    %v330 = vsel %vm210, %v293, 0
    %v333 = vsel %vm210, %v294, 0
    %v336 = vsel %vm210, %v295, 0
    %v339 = vsel %vm210, %v296, 0
    %v342 = vsel %vm210, %v297, 0
    %v345 = vsel %vm210, %v298, 0
    %347 = vmatpush.msra.mxu0 0.0
    %348 = vmatpush.msra.mxu0 0.0
    %349 = vmatpush.msra.mxu0 0.0
    %350 = vmatpush.msra.mxu0 0.0
    %351 = vmatpush.msra.mxu0 0.0
    %352 = vmatpush.msra.mxu0 0.0
    %353 = vmatpush.msra.mxu0 0.0
    %354 = vmatpush.msra.mxu0 0.0
    %355 = vmatpush.msra.mxu0 %v314
    %356 = vmatpush.msra.mxu0 %v312
    %357 = vmatpush.msra.mxu0 %v310
    %358 = vmatpush.msra.mxu0 %v308
    %359 = vmatpush.msra.mxu0 %v306
    %360 = vmatpush.msra.mxu0 %v304
    %361 = vmatpush.msra.mxu0 %v302
    %362 = vmatpush.msra.mxu0 %v300
    %363 = vmatmul.f32.gmra.mxu0 %v324
    %v364 = vpop.f32.mrf.mxu0
    %v365 = vadd.f32 0.0, %v364
    %366 = vmatmul.f32.gmra.mxu0 %v327
    %v367 = vpop.f32.mrf.mxu0
    %v368 = vadd.f32 0.0, %v367
    %369 = vmatmul.f32.gmra.mxu0 %v330
    %v370 = vpop.f32.mrf.mxu0
    %v371 = vadd.f32 0.0, %v370
    %372 = vmatmul.f32.gmra.mxu0 %v333
    %v373 = vpop.f32.mrf.mxu0
    %v374 = vadd.f32 0.0, %v373
    %375 = vmatmul.f32.gmra.mxu0 %v336
    %v376 = vpop.f32.mrf.mxu0
    %v377 = vadd.f32 0.0, %v376
    %378 = vmatmul.f32.gmra.mxu0 %v339
    %v379 = vpop.f32.mrf.mxu0
    %v380 = vadd.f32 0.0, %v379
    %381 = vmatmul.f32.gmra.mxu0 %v342
    %v382 = vpop.f32.mrf.mxu0
    %v383 = vadd.f32 0.0, %v382
    %384 = vmatmul.f32.gmra.mxu0 %v345
    %v385 = vpop.f32.mrf.mxu0
    %v386 = vadd.f32 0.0, %v385
    %387 = vdwg.mxu0
    %389 = vrot.lane.b32.xlu0 %v47, 32
    %v390 = vpop.permute.xlu0 %389
    %v393 = vsel %vm112, %v371, 0
    %v396 = vsel %vm112, %v374, 0
    %398 = vmatpush.msra.mxu0 0.0
    %399 = vmatpush.msra.mxu0 0.0
    %400 = vmatpush.msra.mxu0 0.0
    %401 = vmatpush.msra.mxu0 0.0
    %402 = vmatpush.msra.mxu0 0.0
    %403 = vmatpush.msra.mxu0 0.0
    %404 = vmatpush.msra.mxu0 0.0
    %405 = vmatpush.msra.mxu0 0.0
    %406 = vmatpush.msra.mxu0 0.0
    %407 = vmatpush.msra.mxu0 0.0
    %408 = vmatpush.msra.mxu0 0.0
    %409 = vmatpush.msra.mxu0 0.0
    %410 = vmatpush.msra.mxu0 0.0
    %411 = vmatpush.msra.mxu0 0.0
    %412 = vmatpush.msra.mxu0 0.0
    %413 = vmatpush.msra.mxu0 %v390
    %414 = vmatmul.f32.gmra.mxu0 %v393
    %v415 = vpop.f32.mrf.mxu0
    %v416 = vadd.f32 0.0, %v415
    %417 = vmatmul.f32.gmra.mxu0 %v396
    %v418 = vpop.f32.mrf.mxu0
    %v419 = vadd.f32 0.0, %v418
    %420 = vdwg.mxu0
    %422 = vrot.lane.b32.xlu0 %v46, 32
    %v423 = vpop.permute.xlu0 %422
    %v426 = vsel %vm112, %v365, 0
    %v429 = vsel %vm112, %v368, 0
    %431 = vmatpush.msra.mxu0 0.0
    %432 = vmatpush.msra.mxu0 0.0
    %433 = vmatpush.msra.mxu0 0.0
    %434 = vmatpush.msra.mxu0 0.0
    %435 = vmatpush.msra.mxu0 0.0
    %436 = vmatpush.msra.mxu0 0.0
    %437 = vmatpush.msra.mxu0 0.0
    %438 = vmatpush.msra.mxu0 0.0
    %439 = vmatpush.msra.mxu0 0.0
    %440 = vmatpush.msra.mxu0 0.0
    %441 = vmatpush.msra.mxu0 0.0
    %442 = vmatpush.msra.mxu0 0.0
    %443 = vmatpush.msra.mxu0 0.0
    %444 = vmatpush.msra.mxu0 0.0
    %445 = vmatpush.msra.mxu0 0.0
    %446 = vmatpush.msra.mxu0 %v423
    %447 = vmatmul.f32.gmra.mxu0 %v426
    %v448 = vpop.f32.mrf.mxu0
    %v449 = vadd.f32 %v416, %v448
    %450 = vmatmul.f32.gmra.mxu0 %v429
    %v451 = vpop.f32.mrf.mxu0
    %v452 = vadd.f32 %v419, %v451
    %453 = vdwg.mxu0
    %455 = vrot.lane.b32.xlu0 %v48, 32
    %v456 = vpop.permute.xlu0 %455
    %v459 = vsel %vm112, %v377, 0
    %v462 = vsel %vm112, %v380, 0
    %464 = vmatpush.msra.mxu0 0.0
    %465 = vmatpush.msra.mxu0 0.0
    %466 = vmatpush.msra.mxu0 0.0
    %467 = vmatpush.msra.mxu0 0.0
    %468 = vmatpush.msra.mxu0 0.0
    %469 = vmatpush.msra.mxu0 0.0
    %470 = vmatpush.msra.mxu0 0.0
    %471 = vmatpush.msra.mxu0 0.0
    %472 = vmatpush.msra.mxu0 0.0
    %473 = vmatpush.msra.mxu0 0.0
    %474 = vmatpush.msra.mxu0 0.0
    %475 = vmatpush.msra.mxu0 0.0
    %476 = vmatpush.msra.mxu0 0.0
    %477 = vmatpush.msra.mxu0 0.0
    %478 = vmatpush.msra.mxu0 0.0
    %479 = vmatpush.msra.mxu0 %v456
    %480 = vmatmul.f32.gmra.mxu0 %v459
    %v481 = vpop.f32.mrf.mxu0
    %v482 = vadd.f32 0.0, %v481
    %483 = vmatmul.f32.gmra.mxu0 %v462
    %v484 = vpop.f32.mrf.mxu0
    %v485 = vadd.f32 0.0, %v484
    %486 = vdwg.mxu0
    %v487 = vadd.f32 %v449, %v482
    %v488 = vadd.f32 %v452, %v485
    %490 = vrot.lane.b32.xlu0 %v49, 32
    %v491 = vpop.permute.xlu0 %490
    %v494 = vsel %vm112, %v383, 0
    %v497 = vsel %vm112, %v386, 0
    %499 = vmatpush.msra.mxu0 0.0
    %500 = vmatpush.msra.mxu0 0.0
    %501 = vmatpush.msra.mxu0 0.0
    %502 = vmatpush.msra.mxu0 0.0
    %503 = vmatpush.msra.mxu0 0.0
    %504 = vmatpush.msra.mxu0 0.0
    %505 = vmatpush.msra.mxu0 0.0
    %506 = vmatpush.msra.mxu0 0.0
    %507 = vmatpush.msra.mxu0 0.0
    %508 = vmatpush.msra.mxu0 0.0
    %509 = vmatpush.msra.mxu0 0.0
    %510 = vmatpush.msra.mxu0 0.0
    %511 = vmatpush.msra.mxu0 0.0
    %512 = vmatpush.msra.mxu0 0.0
    %513 = vmatpush.msra.mxu0 0.0
    %514 = vmatpush.msra.mxu0 %v491
    %515 = vmatmul.f32.gmra.mxu0 %v494
    %v516 = vpop.f32.mrf.mxu0
    %v517 = vadd.f32 0.0, %v516
    %518 = vmatmul.f32.gmra.mxu0 %v497
    %v519 = vpop.f32.mrf.mxu0
    %v520 = vadd.f32 0.0, %v519
    %521 = vdwg.mxu0
    %v522 = vadd.f32 %v487, %v517
    %v523 = vadd.f32 %v488, %v520
    %525 = vrot.lane.b32.xlu0 %v51, 32
    %v526 = vpop.permute.xlu0 %525
    %v528 = vadd.f32 %v522, %v526
    %v529 = vadd.f32 %v523, %v526
    %v530 = vadd.f32 %v44, %v528
    %v531 = vadd.f32 %v45, %v529
    %v532 = vld [vmem:[#allocation5 + $0x23] sm:$0x1]
    %v533 = vld [vmem:[#allocation5 + $0x24] sm:$0x1]
    %v534 = vsel %vm52, %v530, 0.0
    %535 = vadd.xlane.f32.xlu0 %v534
    %v536 = vpop.xlane.xlu0 %535
    %v537 = vsel %vm52, %v531, 0.0
    %538 = vadd.xlane.f32.xlu0 %v537
    %v539 = vpop.xlane.xlu0 %538
    %v540 = vrcp.pop 32.0
    %v541 = vmul.f32 32.0, %v540
    %v542 = vsub.f32 1.0, %v541
    %v543 = vmul.f32 %v540, %v542
    %v544 = vadd.f32 %v540, %v543
    %vm545 = vweird.f32 %v540
    %v546 = vsel %vm545, %v540, %v544
    %v547 = vmul.f32 %v536, %v546
    %v548 = vmul.f32 %v539, %v546
    %v549 = vsub.f32 %v530, %v547
    %v550 = vsub.f32 %v531, %v548
    %v551 = vmul.f32 %v549, %v549
    %v552 = vmul.f32 %v550, %v550
    %v553 = vsel %vm52, %v551, 0.0
    %554 = vadd.xlane.f32.xlu0 %v553
    %v555 = vpop.xlane.xlu0 %554
    %v556 = vsel %vm52, %v552, 0.0
    %557 = vadd.xlane.f32.xlu0 %v556
    %v558 = vpop.xlane.xlu0 %557
    %v559 = vmul.f32 %v555, %v546
    %v560 = vmul.f32 %v558, %v546
    %v561 = vadd.f32 %v559, 1e-05
    %v562 = vadd.f32 %v560, 1e-05
    %v563 = vrsqrt.pop %v561
    %v564 = vmul.f32 %v563, %v561
    %v565 = vmul.f32 %v564, %v563
    %v566 = vmul.f32 0.5, %v565
    %v567 = vsub.f32 1.5, %v566
    %v568 = vmul.f32 %v563, %v567
    %vm569 = vweird.f32 %v561
    %vm570 = vweird.f32 %v563
    %vm571 = vmor %vm569, %vm570
    %v572 = vsel %vm571, %v563, %v568
    %v573 = vrsqrt.pop %v562
    %v574 = vmul.f32 %v573, %v562
    %v575 = vmul.f32 %v574, %v573
    %v576 = vmul.f32 0.5, %v575
    %v577 = vsub.f32 1.5, %v576
    %v578 = vmul.f32 %v573, %v577
    %vm579 = vweird.f32 %v562
    %vm580 = vweird.f32 %v573
    %vm581 = vmor %vm579, %vm580
    %v582 = vsel %vm581, %v573, %v578
    %v583 = vmul.f32 %v549, %v572
    %v584 = vmul.f32 %v550, %v582
    %v585 = vperm.slane %v532, 0
    %v586 = vmul.f32 %v583, %v585
    %v587 = vmul.f32 %v584, %v585
    %v588 = vperm.slane %v533, 0
    %v589 = vadd.f32 %v586, %v588
    %v590 = vadd.f32 %v587, %v588
    %v591 = vld [vmem:[#allocation5 + $0x28] sm:$0xff]
    %v592 = vld [vmem:[#allocation5 + $0x30] sm:$0xff]
    %v593 = vld [vmem:[#allocation5 + $0x38] sm:$0xff]
    %v594 = vld [vmem:[#allocation5 + $0x40] sm:$0xff]
    %v595 = vld [vmem:[#allocation5 + $0x21] sm:$0x1]
    %v596 = vperm.slane %v595, 0
    %v598 = vsel %vm52, %v589, 0
    %v601 = vsel %vm52, %v590, 0
    %603 = vmatpush.msra.mxu0 0.0
    %604 = vmatpush.msra.mxu0 0.0
    %605 = vmatpush.msra.mxu0 0.0
    %606 = vmatpush.msra.mxu0 0.0
    %607 = vmatpush.msra.mxu0 0.0
    %608 = vmatpush.msra.mxu0 0.0
    %609 = vmatpush.msra.mxu0 0.0
    %610 = vmatpush.msra.mxu0 0.0
    %611 = vmatpush.msra.mxu0 0.0
    %612 = vmatpush.msra.mxu0 0.0
    %613 = vmatpush.msra.mxu0 0.0
    %614 = vmatpush.msra.mxu0 0.0
    %615 = vmatpush.msra.mxu0 %v594
    %616 = vmatpush.msra.mxu0 %v593
    %617 = vmatpush.msra.mxu0 %v592
    %618 = vmatpush.msra.mxu0 %v591
    %619 = vmatmul.f32.gmra.mxu0 %v598
    %v620 = vpop.f32.mrf.mxu0
    %v621 = vadd.f32 %v596, %v620
    %622 = vmatmul.f32.gmra.mxu0 %v601
    %v623 = vpop.f32.mrf.mxu0
    %v624 = vadd.f32 %v596, %v623
    %625 = vdwg.mxu0
    %v626 = vmax.f32 %v621, 0.0
    %v627 = vmax.f32 %v624, 0.0
    %v628 = vld [vmem:[#allocation5 + $0x48] sm:$0xff]
    %v629 = vld [vmem:[#allocation5 + $0x50] sm:$0xff]
    %v630 = vld [vmem:[#allocation5 + $0x58] sm:$0xff]
    %v631 = vld [vmem:[#allocation5 + $0x60] sm:$0xff]
    %v632 = vld [vmem:[#allocation5 + $0x68] sm:$0xff]
    %v633 = vld [vmem:[#allocation5 + $0x70] sm:$0xff]
    %v634 = vld [vmem:[#allocation5 + $0x78] sm:$0xff]
    %v635 = vld [vmem:[#allocation5 + $0x80] sm:$0xff]
    %v636 = vld [vmem:[#allocation5 + $0x22] sm:$0x1]
    %v637 = vperm.slane %v636, 0
    %v639 = vsel %vm210, %v626, 0
    %v642 = vsel %vm210, %v627, 0
    %644 = vmatpush.msra.mxu0 0.0
    %645 = vmatpush.msra.mxu0 0.0
    %646 = vmatpush.msra.mxu0 0.0
    %647 = vmatpush.msra.mxu0 0.0
    %648 = vmatpush.msra.mxu0 0.0
    %649 = vmatpush.msra.mxu0 0.0
    %650 = vmatpush.msra.mxu0 0.0
    %651 = vmatpush.msra.mxu0 0.0
    %652 = vmatpush.msra.mxu0 %v635
    %653 = vmatpush.msra.mxu0 %v634
    %654 = vmatpush.msra.mxu0 %v633
    %655 = vmatpush.msra.mxu0 %v632
    %656 = vmatpush.msra.mxu0 %v631
    %657 = vmatpush.msra.mxu0 %v630
    %658 = vmatpush.msra.mxu0 %v629
    %659 = vmatpush.msra.mxu0 %v628
    %660 = vmatmul.f32.gmra.mxu0 %v639
    %v661 = vpop.f32.mrf.mxu0
    %v662 = vadd.f32 %v637, %v661
    %663 = vmatmul.f32.gmra.mxu0 %v642
    %v664 = vpop.f32.mrf.mxu0
    %v665 = vadd.f32 %v637, %v664
    %666 = vdwg.mxu0
    %v667 = vadd.f32 %v589, %v662
    %v668 = vadd.f32 %v590, %v665
    %v669 = vld [vmem:[#allocation5 + $0x25] sm:$0x1]
    %v670 = vld [vmem:[#allocation5 + $0x26] sm:$0x1]
    %v671 = vsel %vm52, %v667, 0.0
    %672 = vadd.xlane.f32.xlu0 %v671
    %v673 = vpop.xlane.xlu0 %672
    %v674 = vsel %vm52, %v668, 0.0
    %675 = vadd.xlane.f32.xlu0 %v674
    %v676 = vpop.xlane.xlu0 %675
    %v677 = vmul.f32 %v673, %v546
    %v678 = vmul.f32 %v676, %v546
    %v679 = vsub.f32 %v667, %v677
    %v680 = vsub.f32 %v668, %v678
    %v681 = vmul.f32 %v679, %v679
    %v682 = vmul.f32 %v680, %v680
    %v683 = vsel %vm52, %v681, 0.0
    %684 = vadd.xlane.f32.xlu0 %v683
    %v685 = vpop.xlane.xlu0 %684
    %v686 = vsel %vm52, %v682, 0.0
    %687 = vadd.xlane.f32.xlu0 %v686
    %v688 = vpop.xlane.xlu0 %687
    %v689 = vmul.f32 %v685, %v546
    %v690 = vmul.f32 %v688, %v546
    %v691 = vadd.f32 %v689, 1e-05
    %v692 = vadd.f32 %v690, 1e-05
    %v693 = vrsqrt.pop %v691
    %v694 = vmul.f32 %v693, %v691
    %v695 = vmul.f32 %v694, %v693
    %v696 = vmul.f32 0.5, %v695
    %v697 = vsub.f32 1.5, %v696
    %v698 = vmul.f32 %v693, %v697
    %vm699 = vweird.f32 %v691
    %vm700 = vweird.f32 %v693
    %vm701 = vmor %vm699, %vm700
    %v702 = vsel %vm701, %v693, %v698
    %v703 = vrsqrt.pop %v692
    %v704 = vmul.f32 %v703, %v692
    %v705 = vmul.f32 %v704, %v703
    %v706 = vmul.f32 0.5, %v705
    %v707 = vsub.f32 1.5, %v706
    %v708 = vmul.f32 %v703, %v707
    %vm709 = vweird.f32 %v692
    %vm710 = vweird.f32 %v703
    %vm711 = vmor %vm709, %vm710
    %v712 = vsel %vm711, %v703, %v708
    %v713 = vmul.f32 %v679, %v702
    %v714 = vmul.f32 %v680, %v712
    %v715 = vperm.slane %v669, 0
    %v716 = vmul.f32 %v713, %v715
    %v717 = vmul.f32 %v714, %v715
    %v718 = vperm.slane %v670, 0
    %v719 = vadd.f32 %v716, %v718
    %v720 = vadd.f32 %v717, %v718
    %721 = vst.msk [vmem:[#allocation7] sm:$0xff] %vm52, %v719
    %722 = vst.msk [vmem:[#allocation7 + $0x8] sm:$0xff] %vm52, %v720
    // Predicated region
    $region18: #{tpu_custom_call.1} parent=1 // pred_check
      _
    $region19: #{tpu_custom_call.1} parent=1 // pred_check_branch
      %724 = sbr.rel (0) target = $region21
    $region20: #{tpu_custom_call.1} parent=1 // pred_region
      %726 = vsyncadd [#allocation4], 0
      %s727 = sshll.u32 [#allocation7], 4
      %s728 = int_to_ptr.vmem [resolvable:$true] %s727
      %s729 = sshll.u32 %s2, 4
      %s730 = int_to_ptr.hbm [resolvable:$true] %s729
      %735 = dma.vmem_to_hbm [thread:$0]  %s728, 256, %s730, [#allocation4], 128, 128, 8
    $region21: #{tpu_custom_call.1} parent=1 // pred_fallthru
      _
    // Predicated region
    $region22: #{tpu_custom_call.1} parent=1 // pred_check
      _
    $region23: #{tpu_custom_call.1} parent=1 // pred_check_branch
      %737 = sbr.rel (0) target = $region25
    $region24: #{tpu_custom_call.1} parent=1 // pred_region
      %739 = dma.done [#allocation4], 256
    $region25: #{tpu_custom_call.1} parent=1 // pred_fallthru
      _
    %740 = vsyncpa [#allocation3], 1
    %741 = vsyncpa [#allocation6], 1
    %742 = vsyncpa [#allocation4], 1

</llo_original>
